<compile_context>
chip_gen: v6e
topology: v6e:2x2x1
jax: 0.10.0
libtpu: 0.0.40
codegen_flags: <defaults>
</compile_context>

<pallas_src>
import functools
import math

import jax
import jax.numpy as jnp
from jax.experimental import pallas as pl
from jax.experimental.pallas import tpu as pltpu


def _inverse_softplus(y: float) -> float:
    # log(exp(y) - 1); caller guarantees y > 0.
    return math.log(math.expm1(y))


def _round_up(x: int, m: int) -> int:
    return ((x + m - 1) // m) * m


def _broadcast_kernel(row_ref, out_ref):
    # row_ref: (1, dim_pad) precomputed variance row (resident across the grid,
    # constant index_map => DMA'd once).  out_ref: (TB, dim_pad) output tile.
    out_ref[...] = jnp.broadcast_to(row_ref[...], out_ref.shape).astype(out_ref.dtype)


@functools.lru_cache(maxsize=None)
def _build_forward(batch: int, dim: int, shift: float, min_var: float,
                   use_pallas: bool):
    """Returns a jitted fn(raw_var[1, dim]) -> var[batch, dim] (float32)."""
    if not use_pallas:
        def fwd_small(raw_var):
            z = raw_var.astype(jnp.float32) + jnp.float32(shift)
            row = jax.nn.softplus(z) + jnp.float32(min_var)
            return jnp.broadcast_to(row, (batch, dim))
        return jax.jit(fwd_small)

    # Lane-dense output: pad feature dim to a multiple of 128.
    dim_pad = _round_up(dim, 128)
    # Sublane alignment: pad batch up to a multiple of 8.
    batch_pad = _round_up(batch, 8)

    # Batch tile: multiple of 8, output block capped at ~4 MiB so a
    # double-buffered block stays well inside v7x's 32 MiB scoped VMEM.
    target_block_bytes = 4 * 1024 * 1024
    tb = (target_block_bytes // (dim_pad * 4)) // 8 * 8
    tb = max(8, min(tb, 2048, batch_pad))

    grid = (pl.cdiv(batch_pad, tb),)

    bcast = pl.pallas_call(
        _broadcast_kernel,
        out_shape=jax.ShapeDtypeStruct((batch_pad, dim_pad), jnp.float32),
        grid=grid,
        in_specs=[pl.BlockSpec((1, dim_pad), lambda i: (0, 0))],
        out_specs=pl.BlockSpec((tb, dim_pad), lambda i: (i, 0)),
        compiler_params=pltpu.CompilerParams(
            dimension_semantics=("parallel",)),
    )

    def fwd(raw_var):
        # Softplus hoisted out of the kernel: one (1, dim) row, plain JAX/EUP.
        z = raw_var.astype(jnp.float32) + jnp.float32(shift)
        row = jax.nn.softplus(z) + jnp.float32(min_var)          # (1, dim)
        if dim_pad != dim:
            row = jnp.pad(row, ((0, 0), (0, dim_pad - dim)))      # (1, dim_pad)
        out = bcast(row)                                          # (batch_pad, dim_pad)
        if batch_pad != batch or dim_pad != dim:
            out = out[:batch, :dim]
        return out

    return jax.jit(fwd)


class ConstantUncertaintyLayer:
    """JAX/Pallas port of ssm_rl.common.modules.ConstantUncertaintyLayer."""

    # Outputs smaller than this bypass Pallas (launch overhead dominates).
    _DEFAULT_PALLAS_MIN_BYTES = 1 << 20

    def __init__(self, dim: int, init_var: float, min_var: float, learn: bool,
                 pallas_min_bytes: int = _DEFAULT_PALLAS_MIN_BYTES):
        assert init_var > min_var, "init_var must exceed min_var (inverse_softplus domain)"
        self.dim = int(dim)
        self.init_var = float(init_var)
        self.min_var = float(min_var)
        self.learn = learn  # no effect on forward math
        self.pallas_min_bytes = int(pallas_min_bytes)
        # deterministic init: zeros, exactly like nn.Parameter(torch.zeros(1, dim))
        self.raw_var = jnp.zeros((1, self.dim), dtype=jnp.float32)
        self._shift = _inverse_softplus(self.init_var - self.min_var)

    def __call__(self, state_in):
        if isinstance(state_in, int):
            batch_size = int(state_in)
        else:
            batch_size = int(state_in.shape[0])

        use_pallas = (batch_size * self.dim * 4) >= self.pallas_min_bytes
        fwd = _build_forward(batch_size, self.dim, self._shift, self.min_var,
                             use_pallas)
        return fwd(self.raw_var)


if __name__ == "__main__":
    key = jax.random.PRNGKey(0)
    batch, dim = 2, 32
    # state_in can be a tensor (only its batch dim is used) or an int.
    state_in = jax.random.normal(key, (batch, dim), dtype=jnp.float32)

    init_var, min_var = 1.0, 0.01
    # Force the Pallas path even at this tiny size so the kernel is exercised.
    layer = ConstantUncertaintyLayer(dim=dim, init_var=init_var, min_var=min_var,
                                     learn=True, pallas_min_bytes=0)

    out = jax.block_until_ready(layer(state_in))

    # reference check in plain JAX
    shift = math.log(math.expm1(init_var - min_var))
    ref = jax.nn.softplus(jnp.zeros((batch, dim), jnp.float32) + shift) + min_var
    assert out.shape == (batch, dim)
    assert out.dtype == jnp.float32
    assert jnp.allclose(out, ref, atol=1e-5), "mismatch vs reference (tensor path)"
    # at raw_var == 0 the variance must equal init_var
    assert jnp.allclose(out, jnp.full((batch, dim), init_var), atol=1e-5)

    # also exercise the int code path (different batch => separate cached kernel)
    out2 = jax.block_until_ready(layer(4))
    assert out2.shape == (4, dim)
    assert jnp.allclose(out2, ref[0], atol=1e-5), "mismatch vs reference (int path)"

    # and the small-shape bypass path (no Pallas) gives identical values
    layer_bypass = ConstantUncertaintyLayer(dim=dim, init_var=init_var,
                                            min_var=min_var, learn=False)
    out3 = jax.block_until_ready(layer_bypass(state_in))
    assert jnp.allclose(out3, out, atol=1e-6), "pallas vs bypass mismatch"

    print("KERNEL_OK")
</pallas_src>

<mosaic_0001>
module attributes {stable_mosaic.version = 11 : i64} {
  func.func @_broadcast_kernel(%arg0: i32, %arg1: memref<1x128xf32, #tpu.memory_space<vmem>>, %arg2: memref<8x128xf32, #tpu.memory_space<vmem>>) attributes {dimension_semantics = [#tpu.dimension_semantics<parallel>], iteration_bounds = array<i64: 1>, scalar_prefetch = 0 : i64, scratch_operands = 0 : i64, tpu.core_type = #tpu.core_type<tc>, window_params = [{pipeline_mode = #tpu.pipeline_mode<synchronous>, transform_indices = @transform_0, window_bounds = array<i64: 1, 128>}, {transform_indices = @transform_1, window_bounds = array<i64: 8, 128>}]} {
    %c0 = arith.constant 0 : index
    %c0_0 = arith.constant 0 : index
    %0 = vector.load %arg1[%c0, %c0_0] : memref<1x128xf32, #tpu.memory_space<vmem>>, vector<1x128xf32>
    %1 = vector.shape_cast %0 : vector<1x128xf32> to vector<1x128xf32>
    %2 = vector.broadcast %1 : vector<1x128xf32> to vector<8x128xf32>
    %c0_1 = arith.constant 0 : index
    %c0_2 = arith.constant 0 : index
    %3 = vector.load %arg2[%c0_1, %c0_2] : memref<8x128xf32, #tpu.memory_space<vmem>>, vector<8x128xf32>
    tpu.vector_store %arg2[%c0_1, %c0_2], %2 {strides = array<i32>} : memref<8x128xf32, #tpu.memory_space<vmem>>, vector<8x128xf32>,
    return
  }
  func.func @transform_0(%arg0: i32) -> (i32, i32) {
    %c0_i32 = arith.constant 0 : i32
    %c0_i32_0 = arith.constant 0 : i32
    %c0_i32_1 = arith.constant 0 : i32
    return %c0_i32, %c0_i32_0 : i32, i32
  }
  func.func @transform_1(%arg0: i32) -> (i32, i32) {
    %c0_i32 = arith.constant 0 : i32
    %c0_i32_0 = arith.constant 0 : i32
    return %arg0, %c0_i32 : i32, i32
  }
}

</mosaic_0001>

<llo_original>
// kernel: fwd.1
$region0: #{fwd.1}
  #allocation0 [shape = 'u32[]', space=smem, size = 0x4, offset = 0x4, fixed_abs, tag = 'smem constant byte address 0x4 - core index']
  #allocation1 [shape = 'u32[144,128]{1,0:T(1,128)}', space=vmem, size = 0x12000, scoped, tag = 'internal scratch']
  %s0 = inlined_call_operand.vmem [shape: f32[1,128], index: 0, kind: input, shape index: {}]
  %s1 = inlined_call_operand.vmem [shape: f32[8,128], index: 1, kind: output, shape index: {}]
  %s2 = sld [smem:[#allocation0]]
  $region14: #{fwd.1} parent=0
    _
  %s4 = ssub.s32 1, %s2
  %s5 = scalar_select 0, %s4, %s2
  // Predicated region
  $region2: #{fwd.1} parent=0 // pred_check
    _
  $region3: #{fwd.1} parent=0 // pred_check_branch
    %7 = sbr.rel (0) target = $region5
  $region4: #{fwd.1} parent=0 // pred_region
    _
  $region5: #{fwd.1} parent=0 // pred_fallthru
    _
  %v8 = vld [vmem:[%s0] sm:$0x1]
  %v10 = vlaneseq
  %v11 = vshrl.u32 %v10, 7
  %v12 = vsub.s32 0, %v11
  %v13 = vrot.slane %v8, %v12
  %15 = vst [vmem:[%s1] sm:$0xff] %v13
  // Predicated region
  $region6: #{fwd.1} parent=0 // pred_check
    _
  $region7: #{fwd.1} parent=0 // pred_check_branch
    %17 = sbr.rel (0) target = $region9
  $region8: #{fwd.1} parent=0 // pred_region
    _
  $region9: #{fwd.1} parent=0 // pred_fallthru
    _
  // Predicated region
  $region10: #{fwd.1} parent=0 // pred_check
    _
  $region11: #{fwd.1} parent=0 // pred_check_branch
    %19 = sbr.rel (0) target = $region13
  $region12: #{fwd.1} parent=0 // pred_region
    _
  $region13: #{fwd.1} parent=0 // pred_fallthru
    _

</llo_original>
